<compile_context>
chip_gen: v6e
topology: v6e:2x2x1
jax: 0.10.0
libtpu: 0.0.40
codegen_flags: <defaults>
</compile_context>

<pallas_src>
import functools

import jax
import jax.numpy as jnp
from jax.experimental import pallas as pl
from jax.experimental.pallas import tpu as pltpu


def _round_up(x: int, m: int) -> int:
    return (x + m - 1) // m * m


def _cdiv(a: int, b: int) -> int:
    return (a + b - 1) // b


# ----------------------------- Pallas kernel ------------------------------ #
def _recnet_kernel(y_ref, w1_ref, w_ref, b_ref, out_ref, *, k: int, out_p: int):
    """One row tile of the fused recognition net.

    y_ref  : (TM, ND)    observations (compute dtype, unpadded features)
    w1_ref : (ND, P)     encoder layer-1 weight (compute dtype)
    w_ref  : (4, P, P)   packed/fused weight blocks (compute dtype)
    b_ref  : (6, 1, P)   packed/fused biases (f32); row 5 = tau_min add vector
    out_ref: (TM, OUT_P) [gamma_stat | gamma_dyn | tau_stat | tau_dyn | pad]
    """
    f32 = jnp.float32
    cdt = w_ref.dtype  # MXU operand dtype (bf16 or f32)

    def dense(act, w, bias, relu):
        z = jnp.dot(act, w, preferred_element_type=f32) + bias  # f32 accumulate
        if relu:
            z = jnp.maximum(z, 0.0)
        return z

    x = y_ref[...]

    # phi_enc (pointwise encoder): y -> a
    h = dense(x, w1_ref[...], b_ref[0], True).astype(cdt)
    a = dense(h, w_ref[0], b_ref[1], False).astype(cdt)

    # phi_agg / phi_agg_dyn fused: a -> [b_stat | b_dyn]
    hc = dense(a, w_ref[1], b_ref[2], True).astype(cdt)
    bc = dense(hc, w_ref[2], b_ref[3], False).astype(cdt)

    # all four variational heads fused:
    # [b_stat|b_dyn] -> [gamma_stat | gamma_dyn | tau_stat_pre | tau_dyn_pre]
    z = dense(bc, w_ref[3], b_ref[4], False)            # f32, (TM, P)

    z = z[:, :out_p]                                     # 128-aligned static slice
    tau_add = b_ref[5][:, :out_p]                        # tau_min on static half only
    lane = jax.lax.broadcasted_iota(jnp.int32, z.shape, 1)
    out_ref[...] = jnp.where(lane < 2 * k, z, jnp.exp(z) + tau_add).astype(out_ref.dtype)


# --------------------------- host-side weight packing ----------------------- #
def _pack_weights(params, P, tau_min, compute_dtype):
    f32 = jnp.float32
    nd = params["enc_w1"].shape[0]
    Kp = params["enc_w2"].shape[1]
    K = params["gam_w"].shape[1]

    def pad_w(m, rows):
        r, c = m.shape
        return jnp.zeros((rows, P), f32).at[:r, :c].set(m.astype(f32))

    def pad_b(v):
        v = v.reshape(1, -1).astype(f32)
        return jnp.zeros((1, P), f32).at[:, : v.shape[1]].set(v)

    # fused agg layer 1: a -> [h_stat | h_dyn]
    agg1_w = jnp.concatenate([params["agg_w1"], params["aggd_w1"]], axis=1)
    agg1_b = jnp.concatenate([params["agg_b1"], params["aggd_b1"]], axis=1)
    # fused agg layer 2: block-diagonal  [h_stat|h_dyn] -> [b_stat|b_dyn]
    agg2_w = (jnp.zeros((2 * Kp, 2 * Kp), f32)
              .at[:Kp, :Kp].set(params["agg_w2"].astype(f32))
              .at[Kp:, Kp:].set(params["aggd_w2"].astype(f32)))
    agg2_b = jnp.concatenate([params["agg_b2"], params["aggd_b2"]], axis=1)
    # fused heads: [b_stat|b_dyn] -> [g_stat | g_dyn | t_stat_pre | t_dyn_pre]
    head_w = (jnp.zeros((2 * Kp, 4 * K), f32)
              .at[:Kp, 0:K].set(params["gam_w"].astype(f32))
              .at[Kp:, K:2 * K].set(params["gamd_w"].astype(f32))
              .at[:Kp, 2 * K:3 * K].set(params["tau_w"].astype(f32))
              .at[Kp:, 3 * K:].set(params["taud_w"].astype(f32)))
    head_b = jnp.concatenate(
        [params["gam_b"], params["gamd_b"], params["tau_b"], params["taud_b"]],
        axis=1)

    w1 = pad_w(params["enc_w1"], nd).astype(compute_dtype)                # (ND, P)
    w_slab = jnp.stack([
        pad_w(params["enc_w2"], P), pad_w(agg1_w, P),
        pad_w(agg2_w, P), pad_w(head_w, P),
    ]).astype(compute_dtype)                                              # (4, P, P)

    tau_add = jnp.zeros((1, P), f32).at[:, 2 * K:3 * K].set(jnp.float32(tau_min))
    b_slab = jnp.stack([
        pad_b(params["enc_b1"]), pad_b(params["enc_b2"]),
        pad_b(agg1_b), pad_b(agg2_b), pad_b(head_b), tau_add,
    ])                                                                    # (6, 1, P)
    return w1, w_slab, b_slab


# ------------------------------- wrapper ----------------------------------- #
def recognition_net_second_order(y, params, *, tau_min: float, tile_m: int = 4096,
                                 compute_dtype=jnp.bfloat16):
    """y: (S, M, N, D) float32 -> (gamma, tau), each (S, M, 2K).

    compute_dtype controls the MXU operand dtype for y / weights only; all
    accumulation, bias adds, relu and exp stay in f32.  bf16 (default) halves
    the dominant HBM read on every TPU generation; pass jnp.float32 for
    bit-accurate comparison against an f32 reference.
    """
    S, M, N, D = y.shape
    nd = N * D
    H = params["enc_w1"].shape[1]
    Kp = params["enc_w2"].shape[1]
    K = params["gam_w"].shape[1]

    # 128-lane aligned feature / output widths (clean (8,128) tiles, unmasked stores).
    P = _round_up(max(H, 2 * Kp, 4 * K), 128)
    out_p = _round_up(4 * K, 128)
    rows = S * M
    itemsize = jnp.dtype(compute_dtype).itemsize

    # ---- tile selection: VMEM-aware, minimal padding, >=2 steps for v7x ----
    # per-row VMEM: double-buffered y tile + double-buffered out tile + ~4 live
    # f32 (TM, P) intermediates inside the body.
    per_row = 2 * nd * itemsize + 2 * out_p * 4 + 4 * P * 4
    vmem_row_budget = 16 * 2 ** 20                     # safe on v7x (64 MiB VMEM)
    max_tile_vmem = max(8, (vmem_row_budget // per_row) // 8 * 8)
    tile_cap = max(8, min(_round_up(int(tile_m), 8), max_tile_vmem))
    min_steps = 2 if rows > 8 else 1                   # feed both v7x TensorCores
    n_steps = max(min_steps, _cdiv(rows, tile_cap))
    tile_rows = min(tile_cap, _round_up(_cdiv(rows, n_steps), 8))
    grid = (_cdiv(rows, tile_rows),)

    # No zero-pad copy of y: reshape (free) + dtype cast only.  A ragged last
    # row tile is handled by Pallas boundary clipping (garbage rows are never
    # written back).
    y2d = y.reshape(rows, nd).astype(compute_dtype)
    w1, w_slab, b_slab = _pack_weights(params, P, tau_min, compute_dtype)

    w_bytes = (nd * P + 4 * P * P) * itemsize + 6 * P * 4
    footprint = per_row * tile_rows + 2 * w_bytes
    vmem_limit = int(min(max(4 * footprint, 32 * 2 ** 20), 56 * 2 ** 20))

    cost = pl.CostEstimate(
        flops=2 * rows * (nd * P + 4 * P * P),
        transcendentals=rows * out_p,
        bytes_accessed=rows * nd * itemsize + w_bytes + rows * out_p * 4,
    )

    kernel = functools.partial(_recnet_kernel, k=K, out_p=out_p)

    packed = pl.pallas_call(
        kernel,
        out_shape=jax.ShapeDtypeStruct((rows, out_p), jnp.float32),
        grid=grid,
        in_specs=[
            pl.BlockSpec((tile_rows, nd), lambda i: (i, 0)),
            pl.BlockSpec((nd, P), lambda i: (0, 0)),         # grid-invariant
            pl.BlockSpec((4, P, P), lambda i: (0, 0, 0)),    # grid-invariant
            pl.BlockSpec((6, 1, P), lambda i: (0, 0, 0)),    # grid-invariant
        ],
        out_specs=pl.BlockSpec((tile_rows, out_p), lambda i: (i, 0)),
        compiler_params=pltpu.CompilerParams(
            dimension_semantics=("parallel",),
            vmem_limit_bytes=vmem_limit),
        cost_estimate=cost,
    )(y2d, w1, w_slab, b_slab)

    gamma = packed[:, : 2 * K].reshape(S, M, 2 * K)
    tau = packed[:, 2 * K: 4 * K].reshape(S, M, 2 * K)
    return gamma, tau


# --------------------------- reference (plain JAX) -------------------------- #
def _reference(y, p, tau_min):
    S, M, N, D = y.shape
    x = y.reshape(S * M, N * D)
    h = jnp.maximum(x @ p["enc_w1"] + p["enc_b1"], 0.0)
    a = h @ p["enc_w2"] + p["enc_b2"]
    hs = jnp.maximum(a @ p["agg_w1"] + p["agg_b1"], 0.0)
    b_stat = hs @ p["agg_w2"] + p["agg_b2"]
    hd = jnp.maximum(a @ p["aggd_w1"] + p["aggd_b1"], 0.0)
    b_dyn = hd @ p["aggd_w2"] + p["aggd_b2"]
    gamma_stat = b_stat @ p["gam_w"] + p["gam_b"]
    tau_stat = jnp.exp(b_stat @ p["tau_w"] + p["tau_b"]) + tau_min
    gamma_dyn = b_dyn @ p["gamd_w"] + p["gamd_b"]
    tau_dyn = jnp.exp(b_dyn @ p["taud_w"] + p["taud_b"])
    k = p["gam_w"].shape[1]
    gamma = jnp.concatenate([gamma_stat, gamma_dyn], axis=-1)
    tau = jnp.concatenate([tau_stat, tau_dyn], axis=-1)
    return gamma.reshape(S, M, 2 * k), tau.reshape(S, M, 2 * k)


# ------------------------------ parameter init ------------------------------ #
def init_params(key, nd, hidden, kp, k):
    names_shapes = {
        "enc_w1": (nd, hidden), "enc_b1": (1, hidden),
        "enc_w2": (hidden, kp), "enc_b2": (1, kp),
        "agg_w1": (kp, kp), "agg_b1": (1, kp),
        "agg_w2": (kp, kp), "agg_b2": (1, kp),
        "aggd_w1": (kp, kp), "aggd_b1": (1, kp),
        "aggd_w2": (kp, kp), "aggd_b2": (1, kp),
        "gam_w": (kp, k), "gam_b": (1, k),
        "tau_w": (kp, k), "tau_b": (1, k),
        "gamd_w": (kp, k), "gamd_b": (1, k),
        "taud_w": (kp, k), "taud_b": (1, k),
    }
    params = {}
    keys = jax.random.split(key, len(names_shapes))
    for sub, (name, shape) in zip(keys, sorted(names_shapes.items())):
        fan_in = shape[0] if shape[0] > 1 else shape[1]
        params[name] = (
            jax.random.normal(sub, shape, dtype=jnp.float32)
            * (0.5 / jnp.sqrt(fan_in))
        )
    return params


# ---------------------------------- main ------------------------------------ #
if __name__ == "__main__":
    # Small shapes consistent with the module: y has shape (S, M, N, D).
    S, M, N, D = 2, 8, 16, 4          # S*M = 16 frames, N*D = 64 features
    HIDDEN, KP, K = 32, 32, 16
    TAU_MIN = 0.1

    key = jax.random.PRNGKey(0)
    k_y, k_p = jax.random.split(key)
    y = jax.random.normal(k_y, (S, M, N, D), dtype=jnp.float32)
    params = init_params(k_p, N * D, HIDDEN, KP, K)

    gamma_ref, tau_ref = _reference(y, params, TAU_MIN)

    # f32 operand path: tight check against the plain-JAX reference.
    g32, t32 = recognition_net_second_order(y, params, tau_min=TAU_MIN,
                                            compute_dtype=jnp.float32)
    g32, t32 = jax.block_until_ready((g32, t32))
    assert g32.shape == (S, M, 2 * K) and t32.shape == (S, M, 2 * K)
    assert jnp.allclose(g32, gamma_ref, atol=3e-5, rtol=3e-5)
    assert jnp.allclose(t32, tau_ref, atol=3e-5, rtol=3e-5)

    # Default bf16-operand path (recommended on all generations): bf16 truncation
    # of intermediate activations -> loose tolerance vs the f32 reference.
    gbf, tbf = recognition_net_second_order(y, params, tau_min=TAU_MIN)
    gbf, tbf = jax.block_until_ready((gbf, tbf))
    assert gbf.shape == (S, M, 2 * K) and tbf.shape == (S, M, 2 * K)
    assert jnp.allclose(gbf, gamma_ref, atol=1e-1, rtol=1e-1)
    assert jnp.allclose(tbf, tau_ref, atol=1e-1, rtol=1e-1)

    print("KERNEL_OK")
</pallas_src>

<mosaic_0001>
module attributes {stable_mosaic.version = 11 : i64} {
  func.func @_recnet_kernel(%arg0: i32, %arg1: memref<8x64xf32, #tpu.memory_space<vmem>>, %arg2: memref<64x128xf32, #tpu.memory_space<vmem>>, %arg3: memref<4x128x128xf32, #tpu.memory_space<vmem>>, %arg4: memref<6x1x128xf32, #tpu.memory_space<vmem>>, %arg5: memref<8x128xf32, #tpu.memory_space<vmem>>) attributes {dimension_semantics = [#tpu.dimension_semantics<parallel>], iteration_bounds = array<i64: 2>, scalar_prefetch = 0 : i64, scratch_operands = 0 : i64, tpu.core_type = #tpu.core_type<tc>, window_params = [{transform_indices = @transform_0, window_bounds = array<i64: 8, 64>}, {pipeline_mode = #tpu.pipeline_mode<synchronous>, transform_indices = @transform_1, window_bounds = array<i64: 64, 128>}, {pipeline_mode = #tpu.pipeline_mode<synchronous>, transform_indices = @transform_2, window_bounds = array<i64: 4, 128, 128>}, {pipeline_mode = #tpu.pipeline_mode<synchronous>, transform_indices = @transform_3, window_bounds = array<i64: 6, 1, 128>}, {transform_indices = @transform_4, window_bounds = array<i64: 8, 128>}]} {
    %c0 = arith.constant 0 : index
    %c0_0 = arith.constant 0 : index
    %0 = vector.load %arg1[%c0, %c0_0] : memref<8x64xf32, #tpu.memory_space<vmem>>, vector<8x64xf32>
    %c0_1 = arith.constant 0 : index
    %c0_2 = arith.constant 0 : index
    %1 = vector.load %arg2[%c0_1, %c0_2] : memref<64x128xf32, #tpu.memory_space<vmem>>, vector<64x128xf32>
    %c0_3 = arith.constant 0 : index
    %c0_4 = arith.constant 0 : index
    %c0_5 = arith.constant 0 : index
    %2 = vector.load %arg4[%c0_3, %c0_4, %c0_5] : memref<6x1x128xf32, #tpu.memory_space<vmem>>, vector<1x1x128xf32>
    %3 = vector.shape_cast %2 : vector<1x1x128xf32> to vector<1x128xf32>
    %cst = arith.constant dense<0.000000e+00> : vector<8x128xf32>
    %4 = tpu.matmul %0, %1, %cst {dimension_numbers = #tpu.dot_dimension_numbers<[1], [0], [0], [1], [0, 0, 1, 1], [], []>} : vector<8x64xf32>, vector<64x128xf32>, vector<8x128xf32> -> vector<8x128xf32>
    %5 = vector.broadcast %3 : vector<1x128xf32> to vector<8x128xf32>
    %6 = arith.addf %4, %5 : vector<8x128xf32>
    %cst_6 = arith.constant 0.000000e+00 : f32
    %7 = vector.broadcast %cst_6 : f32 to vector<8x128xf32>
    %8 = arith.maximumf %6, %7 : vector<8x128xf32>
    %c0_7 = arith.constant 0 : index
    %c0_8 = arith.constant 0 : index
    %c0_9 = arith.constant 0 : index
    %9 = vector.load %arg3[%c0_7, %c0_8, %c0_9] : memref<4x128x128xf32, #tpu.memory_space<vmem>>, vector<1x128x128xf32>
    %10 = vector.shape_cast %9 : vector<1x128x128xf32> to vector<128x128xf32>
    %c1 = arith.constant 1 : index
    %c0_10 = arith.constant 0 : index
    %c0_11 = arith.constant 0 : index
    %11 = vector.load %arg4[%c1, %c0_10, %c0_11] : memref<6x1x128xf32, #tpu.memory_space<vmem>>, vector<1x1x128xf32>
    %12 = vector.shape_cast %11 : vector<1x1x128xf32> to vector<1x128xf32>
    %cst_12 = arith.constant dense<0.000000e+00> : vector<8x128xf32>
    %13 = tpu.matmul %8, %10, %cst_12 {dimension_numbers = #tpu.dot_dimension_numbers<[1], [0], [0], [1], [0, 0, 1, 1], [], []>} : vector<8x128xf32>, vector<128x128xf32>, vector<8x128xf32> -> vector<8x128xf32>
    %14 = vector.broadcast %12 : vector<1x128xf32> to vector<8x128xf32>
    %15 = arith.addf %13, %14 : vector<8x128xf32>
    %c1_13 = arith.constant 1 : index
    %c0_14 = arith.constant 0 : index
    %c0_15 = arith.constant 0 : index
    %16 = vector.load %arg3[%c1_13, %c0_14, %c0_15] : memref<4x128x128xf32, #tpu.memory_space<vmem>>, vector<1x128x128xf32>
    %17 = vector.shape_cast %16 : vector<1x128x128xf32> to vector<128x128xf32>
    %c2 = arith.constant 2 : index
    %c0_16 = arith.constant 0 : index
    %c0_17 = arith.constant 0 : index
    %18 = vector.load %arg4[%c2, %c0_16, %c0_17] : memref<6x1x128xf32, #tpu.memory_space<vmem>>, vector<1x1x128xf32>
    %19 = vector.shape_cast %18 : vector<1x1x128xf32> to vector<1x128xf32>
    %cst_18 = arith.constant dense<0.000000e+00> : vector<8x128xf32>
    %20 = tpu.matmul %15, %17, %cst_18 {dimension_numbers = #tpu.dot_dimension_numbers<[1], [0], [0], [1], [0, 0, 1, 1], [], []>} : vector<8x128xf32>, vector<128x128xf32>, vector<8x128xf32> -> vector<8x128xf32>
    %21 = vector.broadcast %19 : vector<1x128xf32> to vector<8x128xf32>
    %22 = arith.addf %20, %21 : vector<8x128xf32>
    %cst_19 = arith.constant 0.000000e+00 : f32
    %23 = vector.broadcast %cst_19 : f32 to vector<8x128xf32>
    %24 = arith.maximumf %22, %23 : vector<8x128xf32>
    %c2_20 = arith.constant 2 : index
    %c0_21 = arith.constant 0 : index
    %c0_22 = arith.constant 0 : index
    %25 = vector.load %arg3[%c2_20, %c0_21, %c0_22] : memref<4x128x128xf32, #tpu.memory_space<vmem>>, vector<1x128x128xf32>
    %26 = vector.shape_cast %25 : vector<1x128x128xf32> to vector<128x128xf32>
    %c3 = arith.constant 3 : index
    %c0_23 = arith.constant 0 : index
    %c0_24 = arith.constant 0 : index
    %27 = vector.load %arg4[%c3, %c0_23, %c0_24] : memref<6x1x128xf32, #tpu.memory_space<vmem>>, vector<1x1x128xf32>
    %28 = vector.shape_cast %27 : vector<1x1x128xf32> to vector<1x128xf32>
    %cst_25 = arith.constant dense<0.000000e+00> : vector<8x128xf32>
    %29 = tpu.matmul %24, %26, %cst_25 {dimension_numbers = #tpu.dot_dimension_numbers<[1], [0], [0], [1], [0, 0, 1, 1], [], []>} : vector<8x128xf32>, vector<128x128xf32>, vector<8x128xf32> -> vector<8x128xf32>
    %30 = vector.broadcast %28 : vector<1x128xf32> to vector<8x128xf32>
    %31 = arith.addf %29, %30 : vector<8x128xf32>
    %c3_26 = arith.constant 3 : index
    %c0_27 = arith.constant 0 : index
    %c0_28 = arith.constant 0 : index
    %32 = vector.load %arg3[%c3_26, %c0_27, %c0_28] : memref<4x128x128xf32, #tpu.memory_space<vmem>>, vector<1x128x128xf32>
    %33 = vector.shape_cast %32 : vector<1x128x128xf32> to vector<128x128xf32>
    %c4 = arith.constant 4 : index
    %c0_29 = arith.constant 0 : index
    %c0_30 = arith.constant 0 : index
    %34 = vector.load %arg4[%c4, %c0_29, %c0_30] : memref<6x1x128xf32, #tpu.memory_space<vmem>>, vector<1x1x128xf32>
    %35 = vector.shape_cast %34 : vector<1x1x128xf32> to vector<1x128xf32>
    %cst_31 = arith.constant dense<0.000000e+00> : vector<8x128xf32>
    %36 = tpu.matmul %31, %33, %cst_31 {dimension_numbers = #tpu.dot_dimension_numbers<[1], [0], [0], [1], [0, 0, 1, 1], [], []>} : vector<8x128xf32>, vector<128x128xf32>, vector<8x128xf32> -> vector<8x128xf32>
    %37 = vector.broadcast %35 : vector<1x128xf32> to vector<8x128xf32>
    %38 = arith.addf %36, %37 : vector<8x128xf32>
    %c5 = arith.constant 5 : index
    %c0_32 = arith.constant 0 : index
    %c0_33 = arith.constant 0 : index
    %39 = vector.load %arg4[%c5, %c0_32, %c0_33] : memref<6x1x128xf32, #tpu.memory_space<vmem>>, vector<1x1x128xf32>
    %40 = vector.shape_cast %39 : vector<1x1x128xf32> to vector<1x128xf32>
    %41 = tpu.iota {dimensions = array<i32: 1>} : vector<8x128xi32>
    %c32_i32 = arith.constant 32 : i32
    %42 = vector.broadcast %c32_i32 : i32 to vector<8x128xi32>
    %43 = arith.cmpi slt, %41, %42 : vector<8x128xi32>
    %44 = math.exp %38 : vector<8x128xf32>
    %45 = vector.broadcast %40 : vector<1x128xf32> to vector<8x128xf32>
    %46 = arith.addf %44, %45 : vector<8x128xf32>
    %47 = arith.select %43, %38, %46 : vector<8x128xi1>, vector<8x128xf32>
    %c0_34 = arith.constant 0 : index
    %c0_35 = arith.constant 0 : index
    %48 = vector.load %arg5[%c0_34, %c0_35] : memref<8x128xf32, #tpu.memory_space<vmem>>, vector<8x128xf32>
    tpu.vector_store %arg5[%c0_34, %c0_35], %47 {strides = array<i32>} : memref<8x128xf32, #tpu.memory_space<vmem>>, vector<8x128xf32>,
    return
  }
  func.func @transform_0(%arg0: i32) -> (i32, i32) {
    %c0_i32 = arith.constant 0 : i32
    %c0_i32_0 = arith.constant 0 : i32
    return %arg0, %c0_i32 : i32, i32
  }
  func.func @transform_1(%arg0: i32) -> (i32, i32) {
    %c0_i32 = arith.constant 0 : i32
    %c0_i32_0 = arith.constant 0 : i32
    %c0_i32_1 = arith.constant 0 : i32
    return %c0_i32, %c0_i32_0 : i32, i32
  }
  func.func @transform_2(%arg0: i32) -> (i32, i32, i32) {
    %c0_i32 = arith.constant 0 : i32
    %c0_i32_0 = arith.constant 0 : i32
    %c0_i32_1 = arith.constant 0 : i32
    %c0_i32_2 = arith.constant 0 : i32
    return %c0_i32, %c0_i32_0, %c0_i32_1 : i32, i32, i32
  }
  func.func @transform_3(%arg0: i32) -> (i32, i32, i32) {
    %c0_i32 = arith.constant 0 : i32
    %c0_i32_0 = arith.constant 0 : i32
    %c0_i32_1 = arith.constant 0 : i32
    %c0_i32_2 = arith.constant 0 : i32
    return %c0_i32, %c0_i32_0, %c0_i32_1 : i32, i32, i32
  }
  func.func @transform_4(%arg0: i32) -> (i32, i32) {
    %c0_i32 = arith.constant 0 : i32
    %c0_i32_0 = arith.constant 0 : i32
    return %arg0, %c0_i32 : i32, i32
  }
}

</mosaic_0001>

<llo_original>
// kernel: tpu_custom_call.1
$region0: #{tpu_custom_call.1}
  #allocation0 [shape = 'u32[]', space=smem, size = 0x4, offset = 0x4, fixed_abs, tag = 'smem constant byte address 0x4 - core index']
  #allocation1 [shape = 'u32[144,128]{1,0:T(1,128)}', space=vmem, size = 0x12000, scoped, tag = 'internal scratch']
  %s0 = inlined_call_operand.hbm [shape: f32[16,64], index: 0, kind: input, shape index: {}]
  %s1 = inlined_call_operand.hbm [shape: f32[64,128], index: 1, kind: input, shape index: {}]
  %s2 = inlined_call_operand.hbm [shape: f32[4,128,128], index: 2, kind: input, shape index: {}]
  %s3 = inlined_call_operand.hbm [shape: f32[6,1,128], index: 3, kind: input, shape index: {}]
  %s4 = inlined_call_operand.hbm [shape: f32[16,128], index: 4, kind: output, shape index: {}]
  %s5 = sld [smem:[#allocation0]]
  $region65: #{tpu_custom_call.1} parent=0
    _
  %s7 = ssub.s32 1, %s5
  %s8 = scalar_select 0, %s7, %s5
  $region1: #{tpu_custom_call.1} parent=0
    #allocation2 [shape = 'u8[8192]{0}', space=vmem, size = 0x2000, scoped, tag = 'input window, operand 0']
    #allocation3 [shape = 's32[2]{0}', space=sflag, size = 0x8, scoped, tag = 'scoped memory for tpu_custom_call.1']
    #allocation4 [shape = 's32[2]{0}', space=sflag, size = 0x8, scoped, tag = 'scoped memory for tpu_custom_call.1']
    #allocation5 [shape = 'u8[32768]{0}', space=vmem, size = 0x8000, scoped, tag = 'input window, operand 1, single buffered']
    #allocation6 [shape = 's32[1]{0}', space=sflag, size = 0x4, scoped, tag = 'scoped memory for tpu_custom_call.1']
    #allocation7 [shape = 'u8[262144]{0}', space=vmem, size = 0x40000, scoped, tag = 'input window, operand 2, single buffered']
    #allocation8 [shape = 'u8[3072]{0}', space=vmem, size = 0xc00, scoped, tag = 'input window, operand 3, single buffered']
    #allocation9 [shape = 's32[1]{0}', space=sflag, size = 0x4, scoped, tag = 'scoped memory for tpu_custom_call.1']
    #allocation10 [shape = 'u8[8192]{0}', space=vmem, size = 0x2000, scoped, tag = 'output window, operand 0']
    %9 = vsyncpa [#allocation3], 0
    %s10 = scalar_lea.sflag [#allocation3], 1
    %11 = vsyncpa %s10, 0
    %12 = vsyncpa [#allocation6], 0
    %13 = vsyncpa [#allocation9], 0
    %14 = vsyncpa [#allocation4], 0
    %s15 = scalar_lea.sflag [#allocation4], 1
    %16 = vsyncpa %s15, 0
    loop: start=0, step=1, limit=4
    $region2: #{tpu_custom_call.1} parent=1 // loop_pre_header
      _
    $region3: #{tpu_custom_call.1} parent=1 // loop_header
      %s18 = sphi 0, %s22
      %p19 = scmp.ge.s32.totalorder %s18, 4
      %s28 = sphi 0, %s30
      %s31 = sphi 0, %s28
      %s32 = sphi 0, %s31
      %s48 = sphi 0, %s32
      %s52 = sphi 0, %s52
      %s54 = sphi 0, %s52
      %s55 = sphi 0, %s54
      %s69 = sphi 0, %s55
      %s73 = sphi 0, %s73
      %s75 = sphi 0, %s73
      %s76 = sphi 0, %s75
      %s90 = sphi 0, %s76
      %s94 = sphi 0, %s94
      %s96 = sphi 0, %s94
      %s97 = sphi 0, %s96
      %s111 = sphi 0, %s97
      %s117 = sphi 0, %s119
      %s120 = sphi 0, %s117
      %s121 = sphi 0, %s120
      %s137 = sphi 0, %s121
    $region4: #{tpu_custom_call.1} parent=1 // loop_header_branch
      %21 = sbr.rel (%p19) target = $region8
    $region5: #{tpu_custom_call.1} parent=1 // loop_body
      %s23 = ssub.s32 %s18, 1
      %s24 = ssub.s32 %s18, 2
      %s25 = sadd.s32 %s18, 1
      %s26 = ssub.s32 %s18, %s25
      %p27 = scmp.eq.s32.totalorder %s26, 0
      %s29 = sadd.s32 %s28, 1
      %s30 = scalar_select %p27, %s28, %s29
      %p33 = pneg %p27
      %p34 = scmp.eq.s32.totalorder %s18, 1
      %p35 = por %p33, %p34
      %p36 = scmp.ne.s32.totalorder %s28, %s31
      %p37 = scmp.eq.s32.totalorder %s18, 0
      %p38 = por %p36, %p37
      %p39 = scmp.ne.s32.totalorder %s28, %s31
      %p40 = scmp.eq.s32.totalorder %s23, 1
      %p41 = por %p39, %p40
      %p42 = scmp.ne.s32.totalorder %s31, %s32
      %p43 = scmp.eq.s32.totalorder %s23, 0
      %p44 = por %p42, %p43
      %p45 = scmp.ne.s32.totalorder %s31, %s32
      %p46 = scmp.eq.s32.totalorder %s24, 1
      %p47 = por %p45, %p46
      %p49 = scmp.ne.s32.totalorder %s32, %s48
      %p50 = scmp.eq.s32.totalorder %s24, 0
      %p51 = por %p49, %p50
      %s53 = sadd.s32 %s52, 1
      %p56 = scmp.eq.s32.totalorder %s18, 1
      %p57 = scmp.ne.s32.totalorder %s52, %s54
      %p58 = scmp.eq.s32.totalorder %s18, 0
      %p59 = por %p57, %p58
      %p60 = scmp.ne.s32.totalorder %s52, %s54
      %p61 = scmp.eq.s32.totalorder %s23, 1
      %p62 = por %p60, %p61
      %p63 = scmp.ne.s32.totalorder %s54, %s55
      %p64 = scmp.eq.s32.totalorder %s23, 0
      %p65 = por %p63, %p64
      %p66 = scmp.ne.s32.totalorder %s54, %s55
      %p67 = scmp.eq.s32.totalorder %s24, 1
      %p68 = por %p66, %p67
      %p70 = scmp.ne.s32.totalorder %s55, %s69
      %p71 = scmp.eq.s32.totalorder %s24, 0
      %p72 = por %p70, %p71
      %s74 = sadd.s32 %s73, 1
      %p77 = scmp.eq.s32.totalorder %s18, 1
      %p78 = scmp.ne.s32.totalorder %s73, %s75
      %p79 = scmp.eq.s32.totalorder %s18, 0
      %p80 = por %p78, %p79
      %p81 = scmp.ne.s32.totalorder %s73, %s75
      %p82 = scmp.eq.s32.totalorder %s23, 1
      %p83 = por %p81, %p82
      %p84 = scmp.ne.s32.totalorder %s75, %s76
      %p85 = scmp.eq.s32.totalorder %s23, 0
      %p86 = por %p84, %p85
      %p87 = scmp.ne.s32.totalorder %s75, %s76
      %p88 = scmp.eq.s32.totalorder %s24, 1
      %p89 = por %p87, %p88
      %p91 = scmp.ne.s32.totalorder %s76, %s90
      %p92 = scmp.eq.s32.totalorder %s24, 0
      %p93 = por %p91, %p92
      %s95 = sadd.s32 %s94, 1
      %p98 = scmp.eq.s32.totalorder %s18, 1
      %p99 = scmp.ne.s32.totalorder %s94, %s96
      %p100 = scmp.eq.s32.totalorder %s18, 0
      %p101 = por %p99, %p100
      %p102 = scmp.ne.s32.totalorder %s94, %s96
      %p103 = scmp.eq.s32.totalorder %s23, 1
      %p104 = por %p102, %p103
      %p105 = scmp.ne.s32.totalorder %s96, %s97
      %p106 = scmp.eq.s32.totalorder %s23, 0
      %p107 = por %p105, %p106
      %p108 = scmp.ne.s32.totalorder %s96, %s97
      %p109 = scmp.eq.s32.totalorder %s24, 1
      %p110 = por %p108, %p109
      %p112 = scmp.ne.s32.totalorder %s97, %s111
      %p113 = scmp.eq.s32.totalorder %s24, 0
      %p114 = por %p112, %p113
      %s115 = ssub.s32 %s18, %s25
      %p116 = scmp.eq.s32.totalorder %s115, 0
      %s118 = sadd.s32 %s117, 1
      %s119 = scalar_select %p116, %s117, %s118
      %p122 = pneg %p116
      %p123 = scmp.eq.s32.totalorder %s18, 1
      %p124 = por %p122, %p123
      %p125 = scmp.ne.s32.totalorder %s117, %s120
      %p126 = scmp.eq.s32.totalorder %s18, 0
      %p127 = por %p125, %p126
      %p128 = scmp.ne.s32.totalorder %s117, %s120
      %p129 = scmp.eq.s32.totalorder %s23, 1
      %p130 = por %p128, %p129
      %p131 = scmp.ne.s32.totalorder %s120, %s121
      %p132 = scmp.eq.s32.totalorder %s23, 0
      %p133 = por %p131, %p132
      %p134 = scmp.ne.s32.totalorder %s120, %s121
      %p135 = scmp.eq.s32.totalorder %s24, 1
      %p136 = por %p134, %p135
      %p138 = scmp.ne.s32.totalorder %s121, %s137
      %p139 = scmp.eq.s32.totalorder %s24, 0
      %p140 = por %p138, %p139
      %p141 = scmp.le.s32.totalorder 1, %s18
      %p142 = scmp.lt.s32.totalorder %s18, 3
      %p143 = pnand %p141, %p142
      %p144 = pneg %p143
      // Predicated region
      $region9: #{tpu_custom_call.1} parent=5 // pred_check
        _
      $region10: #{tpu_custom_call.1} parent=5 // pred_check_branch
        %146 = sbr.rel (%p143) target = $region12
      $region11: #{tpu_custom_call.1} parent=5 // pred_region
        %s147 = ssub.s32 %s18, 1
        // Predicated region
        $region13: #{tpu_custom_call.1} parent=11 // pred_check
          %p148 = pneg %p65
        $region14: #{tpu_custom_call.1} parent=11 // pred_check_branch
          %150 = sbr.rel (%p148) target = $region16
        $region15: #{tpu_custom_call.1} parent=11 // pred_region
          %s152 = ssub.s32 1024, 1024
          %153 = vsyncadd [#allocation6], %s152
          %s154 = sshll.u32 [#allocation5], 4
          %s155 = int_to_ptr.vmem [resolvable:$true] %s154
          %160 = dma.hbm_to_vmem [thread:$0]  %s1, 1024, %s155, [#allocation6], 128, 128, 8
        $region16: #{tpu_custom_call.1} parent=11 // pred_fallthru
          _
        // Predicated region
        $region17: #{tpu_custom_call.1} parent=11 // pred_check
          %p161 = pneg %p86
        $region18: #{tpu_custom_call.1} parent=11 // pred_check_branch
          %163 = sbr.rel (%p161) target = $region20
        $region19: #{tpu_custom_call.1} parent=11 // pred_region
          %s165 = ssub.s32 8192, 8192
          %166 = vsyncadd [#allocation6], %s165
          %s167 = sshll.u32 [#allocation7], 4
          %s168 = int_to_ptr.vmem [resolvable:$true] %s167
          %173 = dma.hbm_to_vmem [thread:$0]  %s2, 8192, %s168, [#allocation6], 128, 128, 8
        $region20: #{tpu_custom_call.1} parent=11 // pred_fallthru
          _
        // Predicated region
        $region21: #{tpu_custom_call.1} parent=11 // pred_check
          %p174 = pneg %p107
        $region22: #{tpu_custom_call.1} parent=11 // pred_check_branch
          %176 = sbr.rel (%p174) target = $region24
        $region23: #{tpu_custom_call.1} parent=11 // pred_region
          %s178 = ssub.s32 96, 96
          %179 = vsyncadd [#allocation9], %s178
          %s180 = sshll.u32 [#allocation8], 4
          %s181 = int_to_ptr.vmem [resolvable:$true] %s180
          %186 = dma.hbm_to_vmem [thread:$0]  %s3, 96, %s181, [#allocation9], 16, 16, 1
        $region24: #{tpu_custom_call.1} parent=11 // pred_fallthru
          _
      $region12: #{tpu_custom_call.1} parent=5 // pred_fallthru
        _
      %p187 = scmp.lt.s32.totalorder %s18, 2
      // Predicated region
      $region25: #{tpu_custom_call.1} parent=5 // pred_check
        %p188 = pneg %p187
      $region26: #{tpu_custom_call.1} parent=5 // pred_check_branch
        %190 = sbr.rel (%p188) target = $region28
      $region27: #{tpu_custom_call.1} parent=5 // pred_region
        // Predicated region
        $region29: #{tpu_custom_call.1} parent=27 // pred_check
          %p191 = pneg %p38
        $region30: #{tpu_custom_call.1} parent=27 // pred_check_branch
          %193 = sbr.rel (%p191) target = $region32
        $region31: #{tpu_custom_call.1} parent=27 // pred_region
          %s194 = sand.u32 %s28, 1
          %s195 = scalar_lea.sflag [#allocation3], %s194
          %s196 = sand.u32 %s28, 1
          %s197 = smul.addr %s196, 8
          %s198 = scalar_lea.vmem [#allocation2], %s197
          %s200 = ssub.s32 128, 128
          %201 = vsyncadd %s195, %s200
          %s202 = smul.addr %s18, 128
          %s203 = scalar_lea.hbm %s0, %s202
          %s205 = sshll.u32 %s198, 4
          %s206 = int_to_ptr.vmem [resolvable:$true] %s205
          %208 = dma.hbm_to_vmem [thread:$0]  %s203, 128, %s206, %s195
        $region32: #{tpu_custom_call.1} parent=27 // pred_fallthru
          _
      $region28: #{tpu_custom_call.1} parent=5 // pred_fallthru
        _
      %p209 = scmp.le.s32.totalorder 1, %s18
      %p210 = scmp.lt.s32.totalorder %s18, 3
      %p211 = pnand %p209, %p210
      %p212 = pneg %p211
      // Predicated region
      $region33: #{tpu_custom_call.1} parent=5 // pred_check
        _
      $region34: #{tpu_custom_call.1} parent=5 // pred_check_branch
        %214 = sbr.rel (%p211) target = $region36
      $region35: #{tpu_custom_call.1} parent=5 // pred_region
        %s215 = ssub.s32 %s18, 1
        %s216 = sand.u32 %s31, 1
        %s217 = scalar_lea.sflag [#allocation3], %s216
        %s218 = sand.u32 %s31, 1
        %s219 = smul.addr %s218, 8
        %s220 = scalar_lea.vmem [#allocation2], %s219
        // Predicated region
        $region37: #{tpu_custom_call.1} parent=35 // pred_check
          %p221 = pneg %p44
        $region38: #{tpu_custom_call.1} parent=35 // pred_check_branch
          %223 = sbr.rel (%p221) target = $region40
        $region39: #{tpu_custom_call.1} parent=35 // pred_region
          %224 = dma.done %s217, 128
        $region40: #{tpu_custom_call.1} parent=35 // pred_fallthru
          _
        // Predicated region
        $region41: #{tpu_custom_call.1} parent=35 // pred_check
          %p225 = pneg %p65
        $region42: #{tpu_custom_call.1} parent=35 // pred_check_branch
          %227 = sbr.rel (%p225) target = $region44
        $region43: #{tpu_custom_call.1} parent=35 // pred_region
          %228 = dma.done [#allocation6], 1024
        $region44: #{tpu_custom_call.1} parent=35 // pred_fallthru
          _
        // Predicated region
        $region45: #{tpu_custom_call.1} parent=35 // pred_check
          %p229 = pneg %p86
        $region46: #{tpu_custom_call.1} parent=35 // pred_check_branch
          %231 = sbr.rel (%p229) target = $region48
        $region47: #{tpu_custom_call.1} parent=35 // pred_region
          %232 = dma.done [#allocation6], 8192
        $region48: #{tpu_custom_call.1} parent=35 // pred_fallthru
          _
        // Predicated region
        $region49: #{tpu_custom_call.1} parent=35 // pred_check
          %p233 = pneg %p107
        $region50: #{tpu_custom_call.1} parent=35 // pred_check_branch
          %235 = sbr.rel (%p233) target = $region52
        $region51: #{tpu_custom_call.1} parent=35 // pred_region
          %236 = dma.done [#allocation9], 96
        $region52: #{tpu_custom_call.1} parent=35 // pred_fallthru
          _
        %s237 = sand.u32 %s31, 1
        %s238 = scalar_lea.sflag [#allocation3], %s237
        %s239 = sand.u32 %s31, 1
        %s240 = smul.addr %s239, 8
        %s241 = scalar_lea.vmem [#allocation2], %s240
        %p242 = pneg %p44
        %p243 = pneg %p41
        %p244 = pneg %p65
        %p245 = pneg %p62
        %p246 = pneg %p86
        %p247 = pneg %p83
        %p248 = pneg %p107
        %p249 = pneg %p104
        %p250 = pneg %p133
        %p251 = pneg %p130
        %s252 = sand.u32 %s120, 1
        %s253 = scalar_lea.sflag [#allocation4], %s252
        %s254 = sand.u32 %s120, 1
        %s255 = smul.addr %s254, 8
        %s256 = scalar_lea.vmem [#allocation10], %s255
        %v257 = vld [vmem:[%s220] sm:$0xff]
        %v258 = vld [vmem:[#allocation5] sm:$0xff]
        %v259 = vld [vmem:[#allocation5 + $0x8] sm:$0xff]
        %v260 = vld [vmem:[#allocation5 + $0x10] sm:$0xff]
        %v261 = vld [vmem:[#allocation5 + $0x18] sm:$0xff]
        %v262 = vld [vmem:[#allocation5 + $0x20] sm:$0xff]
        %v263 = vld [vmem:[#allocation5 + $0x28] sm:$0xff]
        %v264 = vld [vmem:[#allocation5 + $0x30] sm:$0xff]
        %v265 = vld [vmem:[#allocation5 + $0x38] sm:$0xff]
        %v266 = vld [vmem:[#allocation8] sm:$0x1]
        %v268 = vlaneseq
        %v269 = vshrl.u32 %v268, 7
        %v270 = vsub.s32 0, %v269
        %v271 = vrot.slane %v266, %v270
        %vm273 = vcmask 523264
        %v275 = vsel %vm273, %v257, 0
        %277 = vmatprep.subr.mxu0 0.0
        %278 = vmatpush1.msra.mxu0 0.0
        %279 = vmatprep.subr.mxu0 0.0
        %280 = vmatpush1.msra.mxu0 0.0
        %281 = vmatprep.subr.mxu0 0.0
        %282 = vmatpush1.msra.mxu0 0.0
        %283 = vmatprep.subr.mxu0 0.0
        %284 = vmatpush1.msra.mxu0 0.0
        %285 = vmatprep.subr.mxu0 0.0
        %286 = vmatpush1.msra.mxu0 0.0
        %287 = vmatprep.subr.mxu0 0.0
        %288 = vmatpush1.msra.mxu0 0.0
        %289 = vmatprep.subr.mxu0 0.0
        %290 = vmatpush1.msra.mxu0 0.0
        %291 = vmatprep.subr.mxu0 0.0
        %292 = vmatpush1.msra.mxu0 0.0
        %293 = vmatprep.subr.mxu0 0.0
        %294 = vmatpush1.msra.mxu0 %v265
        %295 = vmatprep.subr.mxu0 0.0
        %296 = vmatpush1.msra.mxu0 %v264
        %297 = vmatprep.subr.mxu0 0.0
        %298 = vmatpush1.msra.mxu0 %v263
        %299 = vmatprep.subr.mxu0 0.0
        %300 = vmatpush1.msra.mxu0 %v262
        %301 = vmatprep.subr.mxu0 0.0
        %302 = vmatpush1.msra.mxu0 %v261
        %303 = vmatprep.subr.mxu0 0.0
        %304 = vmatpush1.msra.mxu0 %v260
        %305 = vmatprep.subr.mxu0 0.0
        %306 = vmatpush1.msra.mxu0 %v259
        %307 = vmatprep.subr.mxu0 0.0
        %308 = vmatpush1.msra.mxu0 %v258
        %309 = vmatprep.subr.mxu0 0.0
        %310 = vmatpush2.msra.mxu0 0.0
        %311 = vmatprep.subr.mxu0 0.0
        %312 = vmatpush2.msra.mxu0 0.0
        %313 = vmatprep.subr.mxu0 0.0
        %314 = vmatpush2.msra.mxu0 0.0
        %315 = vmatprep.subr.mxu0 0.0
        %316 = vmatpush2.msra.mxu0 0.0
        %317 = vmatprep.subr.mxu0 0.0
        %318 = vmatpush2.msra.mxu0 0.0
        %319 = vmatprep.subr.mxu0 0.0
        %320 = vmatpush2.msra.mxu0 0.0
        %321 = vmatprep.subr.mxu0 0.0
        %322 = vmatpush2.msra.mxu0 0.0
        %323 = vmatprep.subr.mxu0 0.0
        %324 = vmatpush2.msra.mxu0 0.0
        %325 = vmatprep.subr.mxu0 0.0
        %326 = vmatpush2.msra.mxu0 0.0
        %327 = vmatprep.subr.mxu0 0.0
        %328 = vmatpush2.msra.mxu0 0.0
        %329 = vmatprep.subr.mxu0 0.0
        %330 = vmatpush2.msra.mxu0 0.0
        %331 = vmatprep.subr.mxu0 0.0
        %332 = vmatpush2.msra.mxu0 0.0
        %333 = vmatprep.subr.mxu0 0.0
        %334 = vmatpush2.msra.mxu0 0.0
        %335 = vmatprep.subr.mxu0 0.0
        %336 = vmatpush2.msra.mxu0 0.0
        %337 = vmatprep.subr.mxu0 0.0
        %338 = vmatpush2.msra.mxu0 0.0
        %339 = vmatprep.subr.mxu0 0.0
        %340 = vmatpush2.msra.mxu0 0.0
        %341 = vmatprep.mubr.f32.mxu0 0.0
        %342 = vmatmul.mubr.f32.gmra.mxu0 %v275
        %v343 = vpop.f32.mrf.mxu0
        %v344 = vadd.f32 %v271, %v343
        %v345 = vpop.f32.mrf.mxu0
        %346 = vdwg.mxu0
        %v347 = vmax.f32 %v344, 0.0
        %v348 = vld [vmem:[#allocation7] sm:$0xff]
        %v349 = vld [vmem:[#allocation7 + $0x8] sm:$0xff]
        %v350 = vld [vmem:[#allocation7 + $0x10] sm:$0xff]
        %v351 = vld [vmem:[#allocation7 + $0x18] sm:$0xff]
        %v352 = vld [vmem:[#allocation7 + $0x20] sm:$0xff]
        %v353 = vld [vmem:[#allocation7 + $0x28] sm:$0xff]
        %v354 = vld [vmem:[#allocation7 + $0x30] sm:$0xff]
        %v355 = vld [vmem:[#allocation7 + $0x38] sm:$0xff]
        %v356 = vld [vmem:[#allocation7 + $0x40] sm:$0xff]
        %v357 = vld [vmem:[#allocation7 + $0x48] sm:$0xff]
        %v358 = vld [vmem:[#allocation7 + $0x50] sm:$0xff]
        %v359 = vld [vmem:[#allocation7 + $0x58] sm:$0xff]
        %v360 = vld [vmem:[#allocation7 + $0x60] sm:$0xff]
        %v361 = vld [vmem:[#allocation7 + $0x68] sm:$0xff]
        %v362 = vld [vmem:[#allocation7 + $0x70] sm:$0xff]
        %v363 = vld [vmem:[#allocation7 + $0x78] sm:$0xff]
        %s364 = scalar_lea.vmem [#allocation8], 1
        %v365 = vld [vmem:[%s364] sm:$0x1]
        %v367 = vlaneseq
        %v368 = vshrl.u32 %v367, 7
        %v369 = vsub.s32 0, %v368
        %v370 = vrot.slane %v365, %v369
        %372 = vmatprep.subr.mxu0 0.0
        %373 = vmatpush1.msra.mxu0 %v363
        %374 = vmatprep.subr.mxu0 0.0
        %375 = vmatpush1.msra.mxu0 %v362
        %376 = vmatprep.subr.mxu0 0.0
        %377 = vmatpush1.msra.mxu0 %v361
        %378 = vmatprep.subr.mxu0 0.0
        %379 = vmatpush1.msra.mxu0 %v360
        %380 = vmatprep.subr.mxu0 0.0
        %381 = vmatpush1.msra.mxu0 %v359
        %382 = vmatprep.subr.mxu0 0.0
        %383 = vmatpush1.msra.mxu0 %v358
        %384 = vmatprep.subr.mxu0 0.0
        %385 = vmatpush1.msra.mxu0 %v357
        %386 = vmatprep.subr.mxu0 0.0
        %387 = vmatpush1.msra.mxu0 %v356
        %388 = vmatprep.subr.mxu0 0.0
        %389 = vmatpush1.msra.mxu0 %v355
        %390 = vmatprep.subr.mxu0 0.0
        %391 = vmatpush1.msra.mxu0 %v354
        %392 = vmatprep.subr.mxu0 0.0
        %393 = vmatpush1.msra.mxu0 %v353
        %394 = vmatprep.subr.mxu0 0.0
        %395 = vmatpush1.msra.mxu0 %v352
        %396 = vmatprep.subr.mxu0 0.0
        %397 = vmatpush1.msra.mxu0 %v351
        %398 = vmatprep.subr.mxu0 0.0
        %399 = vmatpush1.msra.mxu0 %v350
        %400 = vmatprep.subr.mxu0 0.0
        %401 = vmatpush1.msra.mxu0 %v349
        %402 = vmatprep.subr.mxu0 0.0
        %403 = vmatpush1.msra.mxu0 %v348
        %404 = vmatprep.subr.mxu0 0.0
        %405 = vmatpush2.msra.mxu0 0.0
        %406 = vmatprep.subr.mxu0 0.0
        %407 = vmatpush2.msra.mxu0 0.0
        %408 = vmatprep.subr.mxu0 0.0
        %409 = vmatpush2.msra.mxu0 0.0
        %410 = vmatprep.subr.mxu0 0.0
        %411 = vmatpush2.msra.mxu0 0.0
        %412 = vmatprep.subr.mxu0 0.0
        %413 = vmatpush2.msra.mxu0 0.0
        %414 = vmatprep.subr.mxu0 0.0
        %415 = vmatpush2.msra.mxu0 0.0
        %416 = vmatprep.subr.mxu0 0.0
        %417 = vmatpush2.msra.mxu0 0.0
        %418 = vmatprep.subr.mxu0 0.0
        %419 = vmatpush2.msra.mxu0 0.0
        %420 = vmatprep.subr.mxu0 0.0
        %421 = vmatpush2.msra.mxu0 0.0
        %422 = vmatprep.subr.mxu0 0.0
        %423 = vmatpush2.msra.mxu0 0.0
        %424 = vmatprep.subr.mxu0 0.0
        %425 = vmatpush2.msra.mxu0 0.0
        %426 = vmatprep.subr.mxu0 0.0
        %427 = vmatpush2.msra.mxu0 0.0
        %428 = vmatprep.subr.mxu0 0.0
        %429 = vmatpush2.msra.mxu0 0.0
        %430 = vmatprep.subr.mxu0 0.0
        %431 = vmatpush2.msra.mxu0 0.0
        %432 = vmatprep.subr.mxu0 0.0
        %433 = vmatpush2.msra.mxu0 0.0
        %434 = vmatprep.subr.mxu0 0.0
        %435 = vmatpush2.msra.mxu0 0.0
        %436 = vmatprep.mubr.f32.mxu0 0.0
        %437 = vmatmul.mubr.f32.gmra.mxu0 %v347
        %v438 = vpop.f32.mrf.mxu0
        %v439 = vadd.f32 %v370, %v438
        %v440 = vpop.f32.mrf.mxu0
        %441 = vdwg.mxu0
        %s442 = scalar_lea.vmem [#allocation7], 128
        %v443 = vld [vmem:[%s442] sm:$0xff]
        %v444 = vld [vmem:[%s442 + $0x8] sm:$0xff]
        %v445 = vld [vmem:[%s442 + $0x10] sm:$0xff]
        %v446 = vld [vmem:[%s442 + $0x18] sm:$0xff]
        %v447 = vld [vmem:[%s442 + $0x20] sm:$0xff]
        %v448 = vld [vmem:[%s442 + $0x28] sm:$0xff]
        %v449 = vld [vmem:[%s442 + $0x30] sm:$0xff]
        %v450 = vld [vmem:[%s442 + $0x38] sm:$0xff]
        %v451 = vld [vmem:[%s442 + $0x40] sm:$0xff]
        %v452 = vld [vmem:[%s442 + $0x48] sm:$0xff]
        %v453 = vld [vmem:[%s442 + $0x50] sm:$0xff]
        %v454 = vld [vmem:[%s442 + $0x58] sm:$0xff]
        %v455 = vld [vmem:[%s442 + $0x60] sm:$0xff]
        %v456 = vld [vmem:[%s442 + $0x68] sm:$0xff]
        %v457 = vld [vmem:[%s442 + $0x70] sm:$0xff]
        %v458 = vld [vmem:[%s442 + $0x78] sm:$0xff]
        %s459 = scalar_lea.vmem [#allocation8], 2
        %v460 = vld [vmem:[%s459] sm:$0x1]
        %v462 = vlaneseq
        %v463 = vshrl.u32 %v462, 7
        %v464 = vsub.s32 0, %v463
        %v465 = vrot.slane %v460, %v464
        %467 = vmatprep.subr.mxu0 0.0
        %468 = vmatpush1.msra.mxu0 %v458
        %469 = vmatprep.subr.mxu0 0.0
        %470 = vmatpush1.msra.mxu0 %v457
        %471 = vmatprep.subr.mxu0 0.0
        %472 = vmatpush1.msra.mxu0 %v456
        %473 = vmatprep.subr.mxu0 0.0
        %474 = vmatpush1.msra.mxu0 %v455
        %475 = vmatprep.subr.mxu0 0.0
        %476 = vmatpush1.msra.mxu0 %v454
        %477 = vmatprep.subr.mxu0 0.0
        %478 = vmatpush1.msra.mxu0 %v453
        %479 = vmatprep.subr.mxu0 0.0
        %480 = vmatpush1.msra.mxu0 %v452
        %481 = vmatprep.subr.mxu0 0.0
        %482 = vmatpush1.msra.mxu0 %v451
        %483 = vmatprep.subr.mxu0 0.0
        %484 = vmatpush1.msra.mxu0 %v450
        %485 = vmatprep.subr.mxu0 0.0
        %486 = vmatpush1.msra.mxu0 %v449
        %487 = vmatprep.subr.mxu0 0.0
        %488 = vmatpush1.msra.mxu0 %v448
        %489 = vmatprep.subr.mxu0 0.0
        %490 = vmatpush1.msra.mxu0 %v447
        %491 = vmatprep.subr.mxu0 0.0
        %492 = vmatpush1.msra.mxu0 %v446
        %493 = vmatprep.subr.mxu0 0.0
        %494 = vmatpush1.msra.mxu0 %v445
        %495 = vmatprep.subr.mxu0 0.0
        %496 = vmatpush1.msra.mxu0 %v444
        %497 = vmatprep.subr.mxu0 0.0
        %498 = vmatpush1.msra.mxu0 %v443
        %499 = vmatprep.subr.mxu0 0.0
        %500 = vmatpush2.msra.mxu0 0.0
        %501 = vmatprep.subr.mxu0 0.0
        %502 = vmatpush2.msra.mxu0 0.0
        %503 = vmatprep.subr.mxu0 0.0
        %504 = vmatpush2.msra.mxu0 0.0
        %505 = vmatprep.subr.mxu0 0.0
        %506 = vmatpush2.msra.mxu0 0.0
        %507 = vmatprep.subr.mxu0 0.0
        %508 = vmatpush2.msra.mxu0 0.0
        %509 = vmatprep.subr.mxu0 0.0
        %510 = vmatpush2.msra.mxu0 0.0
        %511 = vmatprep.subr.mxu0 0.0
        %512 = vmatpush2.msra.mxu0 0.0
        %513 = vmatprep.subr.mxu0 0.0
        %514 = vmatpush2.msra.mxu0 0.0
        %515 = vmatprep.subr.mxu0 0.0
        %516 = vmatpush2.msra.mxu0 0.0
        %517 = vmatprep.subr.mxu0 0.0
        %518 = vmatpush2.msra.mxu0 0.0
        %519 = vmatprep.subr.mxu0 0.0
        %520 = vmatpush2.msra.mxu0 0.0
        %521 = vmatprep.subr.mxu0 0.0
        %522 = vmatpush2.msra.mxu0 0.0
        %523 = vmatprep.subr.mxu0 0.0
        %524 = vmatpush2.msra.mxu0 0.0
        %525 = vmatprep.subr.mxu0 0.0
        %526 = vmatpush2.msra.mxu0 0.0
        %527 = vmatprep.subr.mxu0 0.0
        %528 = vmatpush2.msra.mxu0 0.0
        %529 = vmatprep.subr.mxu0 0.0
        %530 = vmatpush2.msra.mxu0 0.0
        %531 = vmatprep.mubr.f32.mxu0 0.0
        %532 = vmatmul.mubr.f32.gmra.mxu0 %v439
        %v533 = vpop.f32.mrf.mxu0
        %v534 = vadd.f32 %v465, %v533
        %v535 = vpop.f32.mrf.mxu0
        %536 = vdwg.mxu0
        %v537 = vmax.f32 %v534, 0.0
        %s538 = scalar_lea.vmem [#allocation7], 256
        %v539 = vld [vmem:[%s538] sm:$0xff]
        %v540 = vld [vmem:[%s538 + $0x8] sm:$0xff]
        %v541 = vld [vmem:[%s538 + $0x10] sm:$0xff]
        %v542 = vld [vmem:[%s538 + $0x18] sm:$0xff]
        %v543 = vld [vmem:[%s538 + $0x20] sm:$0xff]
        %v544 = vld [vmem:[%s538 + $0x28] sm:$0xff]
        %v545 = vld [vmem:[%s538 + $0x30] sm:$0xff]
        %v546 = vld [vmem:[%s538 + $0x38] sm:$0xff]
        %v547 = vld [vmem:[%s538 + $0x40] sm:$0xff]
        %v548 = vld [vmem:[%s538 + $0x48] sm:$0xff]
        %v549 = vld [vmem:[%s538 + $0x50] sm:$0xff]
        %v550 = vld [vmem:[%s538 + $0x58] sm:$0xff]
        %v551 = vld [vmem:[%s538 + $0x60] sm:$0xff]
        %v552 = vld [vmem:[%s538 + $0x68] sm:$0xff]
        %v553 = vld [vmem:[%s538 + $0x70] sm:$0xff]
        %v554 = vld [vmem:[%s538 + $0x78] sm:$0xff]
        %s555 = scalar_lea.vmem [#allocation8], 3
        %v556 = vld [vmem:[%s555] sm:$0x1]
        %v558 = vlaneseq
        %v559 = vshrl.u32 %v558, 7
        %v560 = vsub.s32 0, %v559
        %v561 = vrot.slane %v556, %v560
        %563 = vmatprep.subr.mxu0 0.0
        %564 = vmatpush1.msra.mxu0 %v554
        %565 = vmatprep.subr.mxu0 0.0
        %566 = vmatpush1.msra.mxu0 %v553
        %567 = vmatprep.subr.mxu0 0.0
        %568 = vmatpush1.msra.mxu0 %v552
        %569 = vmatprep.subr.mxu0 0.0
        %570 = vmatpush1.msra.mxu0 %v551
        %571 = vmatprep.subr.mxu0 0.0
        %572 = vmatpush1.msra.mxu0 %v550
        %573 = vmatprep.subr.mxu0 0.0
        %574 = vmatpush1.msra.mxu0 %v549
        %575 = vmatprep.subr.mxu0 0.0
        %576 = vmatpush1.msra.mxu0 %v548
        %577 = vmatprep.subr.mxu0 0.0
        %578 = vmatpush1.msra.mxu0 %v547
        %579 = vmatprep.subr.mxu0 0.0
        %580 = vmatpush1.msra.mxu0 %v546
        %581 = vmatprep.subr.mxu0 0.0
        %582 = vmatpush1.msra.mxu0 %v545
        %583 = vmatprep.subr.mxu0 0.0
        %584 = vmatpush1.msra.mxu0 %v544
        %585 = vmatprep.subr.mxu0 0.0
        %586 = vmatpush1.msra.mxu0 %v543
        %587 = vmatprep.subr.mxu0 0.0
        %588 = vmatpush1.msra.mxu0 %v542
        %589 = vmatprep.subr.mxu0 0.0
        %590 = vmatpush1.msra.mxu0 %v541
        %591 = vmatprep.subr.mxu0 0.0
        %592 = vmatpush1.msra.mxu0 %v540
        %593 = vmatprep.subr.mxu0 0.0
        %594 = vmatpush1.msra.mxu0 %v539
        %595 = vmatprep.subr.mxu0 0.0
        %596 = vmatpush2.msra.mxu0 0.0
        %597 = vmatprep.subr.mxu0 0.0
        %598 = vmatpush2.msra.mxu0 0.0
        %599 = vmatprep.subr.mxu0 0.0
        %600 = vmatpush2.msra.mxu0 0.0
        %601 = vmatprep.subr.mxu0 0.0
        %602 = vmatpush2.msra.mxu0 0.0
        %603 = vmatprep.subr.mxu0 0.0
        %604 = vmatpush2.msra.mxu0 0.0
        %605 = vmatprep.subr.mxu0 0.0
        %606 = vmatpush2.msra.mxu0 0.0
        %607 = vmatprep.subr.mxu0 0.0
        %608 = vmatpush2.msra.mxu0 0.0
        %609 = vmatprep.subr.mxu0 0.0
        %610 = vmatpush2.msra.mxu0 0.0
        %611 = vmatprep.subr.mxu0 0.0
        %612 = vmatpush2.msra.mxu0 0.0
        %613 = vmatprep.subr.mxu0 0.0
        %614 = vmatpush2.msra.mxu0 0.0
        %615 = vmatprep.subr.mxu0 0.0
        %616 = vmatpush2.msra.mxu0 0.0
        %617 = vmatprep.subr.mxu0 0.0
        %618 = vmatpush2.msra.mxu0 0.0
        %619 = vmatprep.subr.mxu0 0.0
        %620 = vmatpush2.msra.mxu0 0.0
        %621 = vmatprep.subr.mxu0 0.0
        %622 = vmatpush2.msra.mxu0 0.0
        %623 = vmatprep.subr.mxu0 0.0
        %624 = vmatpush2.msra.mxu0 0.0
        %625 = vmatprep.subr.mxu0 0.0
        %626 = vmatpush2.msra.mxu0 0.0
        %627 = vmatprep.mubr.f32.mxu0 0.0
        %628 = vmatmul.mubr.f32.gmra.mxu0 %v537
        %v629 = vpop.f32.mrf.mxu0
        %v630 = vadd.f32 %v561, %v629
        %v631 = vpop.f32.mrf.mxu0
        %632 = vdwg.mxu0
        %s633 = scalar_lea.vmem [#allocation7], 384
        %v634 = vld [vmem:[%s633] sm:$0xff]
        %v635 = vld [vmem:[%s633 + $0x8] sm:$0xff]
        %v636 = vld [vmem:[%s633 + $0x10] sm:$0xff]
        %v637 = vld [vmem:[%s633 + $0x18] sm:$0xff]
        %v638 = vld [vmem:[%s633 + $0x20] sm:$0xff]
        %v639 = vld [vmem:[%s633 + $0x28] sm:$0xff]
        %v640 = vld [vmem:[%s633 + $0x30] sm:$0xff]
        %v641 = vld [vmem:[%s633 + $0x38] sm:$0xff]
        %v642 = vld [vmem:[%s633 + $0x40] sm:$0xff]
        %v643 = vld [vmem:[%s633 + $0x48] sm:$0xff]
        %v644 = vld [vmem:[%s633 + $0x50] sm:$0xff]
        %v645 = vld [vmem:[%s633 + $0x58] sm:$0xff]
        %v646 = vld [vmem:[%s633 + $0x60] sm:$0xff]
        %v647 = vld [vmem:[%s633 + $0x68] sm:$0xff]
        %v648 = vld [vmem:[%s633 + $0x70] sm:$0xff]
        %v649 = vld [vmem:[%s633 + $0x78] sm:$0xff]
        %s650 = scalar_lea.vmem [#allocation8], 4
        %v651 = vld [vmem:[%s650] sm:$0x1]
        %v653 = vlaneseq
        %v654 = vshrl.u32 %v653, 7
        %v655 = vsub.s32 0, %v654
        %v656 = vrot.slane %v651, %v655
        %658 = vmatprep.subr.mxu0 0.0
        %659 = vmatpush1.msra.mxu0 %v649
        %660 = vmatprep.subr.mxu0 0.0
        %661 = vmatpush1.msra.mxu0 %v648
        %662 = vmatprep.subr.mxu0 0.0
        %663 = vmatpush1.msra.mxu0 %v647
        %664 = vmatprep.subr.mxu0 0.0
        %665 = vmatpush1.msra.mxu0 %v646
        %666 = vmatprep.subr.mxu0 0.0
        %667 = vmatpush1.msra.mxu0 %v645
        %668 = vmatprep.subr.mxu0 0.0
        %669 = vmatpush1.msra.mxu0 %v644
        %670 = vmatprep.subr.mxu0 0.0
        %671 = vmatpush1.msra.mxu0 %v643
        %672 = vmatprep.subr.mxu0 0.0
        %673 = vmatpush1.msra.mxu0 %v642
        %674 = vmatprep.subr.mxu0 0.0
        %675 = vmatpush1.msra.mxu0 %v641
        %676 = vmatprep.subr.mxu0 0.0
        %677 = vmatpush1.msra.mxu0 %v640
        %678 = vmatprep.subr.mxu0 0.0
        %679 = vmatpush1.msra.mxu0 %v639
        %680 = vmatprep.subr.mxu0 0.0
        %681 = vmatpush1.msra.mxu0 %v638
        %682 = vmatprep.subr.mxu0 0.0
        %683 = vmatpush1.msra.mxu0 %v637
        %684 = vmatprep.subr.mxu0 0.0
        %685 = vmatpush1.msra.mxu0 %v636
        %686 = vmatprep.subr.mxu0 0.0
        %687 = vmatpush1.msra.mxu0 %v635
        %688 = vmatprep.subr.mxu0 0.0
        %689 = vmatpush1.msra.mxu0 %v634
        %690 = vmatprep.subr.mxu0 0.0
        %691 = vmatpush2.msra.mxu0 0.0
        %692 = vmatprep.subr.mxu0 0.0
        %693 = vmatpush2.msra.mxu0 0.0
        %694 = vmatprep.subr.mxu0 0.0
        %695 = vmatpush2.msra.mxu0 0.0
        %696 = vmatprep.subr.mxu0 0.0
        %697 = vmatpush2.msra.mxu0 0.0
        %698 = vmatprep.subr.mxu0 0.0
        %699 = vmatpush2.msra.mxu0 0.0
        %700 = vmatprep.subr.mxu0 0.0
        %701 = vmatpush2.msra.mxu0 0.0
        %702 = vmatprep.subr.mxu0 0.0
        %703 = vmatpush2.msra.mxu0 0.0
        %704 = vmatprep.subr.mxu0 0.0
        %705 = vmatpush2.msra.mxu0 0.0
        %706 = vmatprep.subr.mxu0 0.0
        %707 = vmatpush2.msra.mxu0 0.0
        %708 = vmatprep.subr.mxu0 0.0
        %709 = vmatpush2.msra.mxu0 0.0
        %710 = vmatprep.subr.mxu0 0.0
        %711 = vmatpush2.msra.mxu0 0.0
        %712 = vmatprep.subr.mxu0 0.0
        %713 = vmatpush2.msra.mxu0 0.0
        %714 = vmatprep.subr.mxu0 0.0
        %715 = vmatpush2.msra.mxu0 0.0
        %716 = vmatprep.subr.mxu0 0.0
        %717 = vmatpush2.msra.mxu0 0.0
        %718 = vmatprep.subr.mxu0 0.0
        %719 = vmatpush2.msra.mxu0 0.0
        %720 = vmatprep.subr.mxu0 0.0
        %721 = vmatpush2.msra.mxu0 0.0
        %722 = vmatprep.mubr.f32.mxu0 0.0
        %723 = vmatmul.mubr.f32.gmra.mxu0 %v630
        %v724 = vpop.f32.mrf.mxu0
        %v725 = vadd.f32 %v656, %v724
        %v726 = vpop.f32.mrf.mxu0
        %727 = vdwg.mxu0
        %s728 = scalar_lea.vmem [#allocation8], 5
        %v729 = vld [vmem:[%s728] sm:$0x1]
        %v730 = vlaneseq
        %v731 = vand.u32 %v730, 127
        %vm732 = vcmp.lt.s32.totalorder %v731, 32
        %v733 = vmul.f32 %v725, 1.442695
        %v734 = vpow.pop %v733
        %v736 = vlaneseq
        %v737 = vshrl.u32 %v736, 7
        %v738 = vsub.s32 0, %v737
        %v739 = vrot.slane %v729, %v738
        %v741 = vadd.f32 %v734, %v739
        %v742 = vsel %vm732, %v725, %v741
        %743 = vst [vmem:[%s256] sm:$0xff] %v742
        %s744 = sand.u32 %s120, 1
        %s745 = scalar_lea.sflag [#allocation4], %s744
        %s746 = sand.u32 %s120, 1
        %s747 = smul.addr %s746, 8
        %s748 = scalar_lea.vmem [#allocation10], %s747
        // Predicated region
        $region53: #{tpu_custom_call.1} parent=35 // pred_check
          %p749 = pneg %p130
        $region54: #{tpu_custom_call.1} parent=35 // pred_check_branch
          %751 = sbr.rel (%p749) target = $region56
        $region55: #{tpu_custom_call.1} parent=35 // pred_region
          %s753 = ssub.s32 128, 128
          %754 = vsyncadd %s745, %s753
          %s755 = smul.addr %s23, 128
          %s756 = scalar_lea.hbm %s4, %s755
          %s758 = sshll.u32 %s748, 4
          %s759 = int_to_ptr.vmem [resolvable:$true] %s758
          %761 = dma.vmem_to_hbm [thread:$0]  %s759, 128, %s756, %s745
        $region56: #{tpu_custom_call.1} parent=35 // pred_fallthru
          _
      $region36: #{tpu_custom_call.1} parent=5 // pred_fallthru
        _
      %p762 = scmp.le.s32.totalorder 2, %s18
      // Predicated region
      $region57: #{tpu_custom_call.1} parent=5 // pred_check
        %p763 = pneg %p762
      $region58: #{tpu_custom_call.1} parent=5 // pred_check_branch
        %765 = sbr.rel (%p763) target = $region60
      $region59: #{tpu_custom_call.1} parent=5 // pred_region
        %s766 = ssub.s32 %s18, 2
        // Predicated region
        $region61: #{tpu_custom_call.1} parent=59 // pred_check
          %p767 = pneg %p136
        $region62: #{tpu_custom_call.1} parent=59 // pred_check_branch
          %769 = sbr.rel (%p767) target = $region64
        $region63: #{tpu_custom_call.1} parent=59 // pred_region
          %s770 = sand.u32 %s121, 1
          %s771 = scalar_lea.sflag [#allocation4], %s770
          %s772 = sand.u32 %s121, 1
          %s773 = smul.addr %s772, 8
          %s774 = scalar_lea.vmem [#allocation10], %s773
          %775 = dma.done %s771, 128
        $region64: #{tpu_custom_call.1} parent=59 // pred_fallthru
          _
      $region60: #{tpu_custom_call.1} parent=5 // pred_fallthru
        _
    $region6: #{tpu_custom_call.1} parent=1 // loop_footer
      %s22 = sadd.s32 1, %s18
    $region7: #{tpu_custom_call.1} parent=1 // loop_footer_branch
      %17 = sbr.rel target = $region3
    $region8: #{tpu_custom_call.1} parent=1 // loop_exit
      _
    %776 = vsyncpa [#allocation3], 1
    %s777 = scalar_lea.sflag [#allocation3], 1
    %778 = vsyncpa %s777, 1
    %779 = vsyncpa [#allocation6], 1
    %780 = vsyncpa [#allocation9], 1
    %781 = vsyncpa [#allocation4], 1
    %s782 = scalar_lea.sflag [#allocation4], 1
    %783 = vsyncpa %s782, 1

</llo_original>
